<compile_context>
chip_gen: v6e
topology: v6e:2x2x1
jax: 0.10.0
libtpu: 0.0.40
codegen_flags: <defaults>
</compile_context>

<pallas_src>
import functools

import jax
import jax.numpy as jnp
from jax import lax
from jax.experimental import pallas as pl
from jax.experimental.pallas import tpu as pltpu


def _d_block_kernel(x_ref, m1_ref, m2_ref, ms_ref, b_ref, gb_ref, clip_ref,
                    out_ref, acc_ref, *, H, W, Cin, Cout, K,
                    use_res, use_clip, learned_shortcut):
    """Fused D_Block forward for one batch element (lane-dense layout).

    x_ref    : (1, H, W*Cin)       input image, NHWC rows flattened on lanes
    m1_ref   : (K, W*Cin,  W*Cout) banded row-operators of conv_r[0]
    m2_ref   : (K, W*Cout, W*Cout) banded row-operators of conv_r[2]
    ms_ref   : (W*Cin, W*Cout)     block-diagonal 1x1 shortcut conv
    b_ref    : (1, W*Cout)         shortcut bias, tiled over W
    gb_ref   : (2,) SMEM           [gamma, beta]
    clip_ref : (1, H, W*Cout)      CLIP feature, lane-dense
    out_ref  : (1, H, W*Cout)
    acc_ref  : (H, W*Cout) f32     scratch accumulator for ky-shifted adds
    """
    f32 = jnp.float32
    NEG = 0.2  # LeakyReLU negative slope

    x = x_ref[0]  # (H, W*Cin), loaded once

    def conv_rows(a, m_ref):
        # 3x3 'same' conv of the lane-dense slab `a` (H, W*Ci) with the banded
        # row operators m_ref (K, W*Ci, W*Co).  kx taps + left/right zero pad
        # live inside the banded matrices; ky taps are placed by accumulating
        # into row-shifted slices of acc_ref (top/bottom zero rows implicit).
        acc_ref[...] = jnp.dot(a, m_ref[1], preferred_element_type=f32)
        acc_ref[1:H, :] = acc_ref[1:H, :] + jnp.dot(
            a[0:H - 1, :], m_ref[0], preferred_element_type=f32)
        acc_ref[0:H - 1, :] = acc_ref[0:H - 1, :] + jnp.dot(
            a[1:H, :], m_ref[2], preferred_element_type=f32)
        return acc_ref[...]

    # conv_r[0] + LeakyReLU(0.2); h1 stays in registers, lane-dense.
    a1 = conv_rows(x, m1_ref)
    h1 = jnp.where(a1 > 0, a1, NEG * a1)            # (H, W*Cout)

    # conv_r[2] + LeakyReLU(0.2)
    a2 = conv_rows(h1, m2_ref)
    res = jnp.where(a2 > 0, a2, NEG * a2)           # (H, W*Cout)

    # shortcut: 1x1 conv (+bias) as a block-diagonal matmul, only if fin!=fout
    if learned_shortcut:
        xs = jnp.dot(x, ms_ref[...], preferred_element_type=f32) + b_ref[...]
    else:
        xs = x.astype(f32)                          # W*Cin == W*Cout here

    out = xs
    if use_res:
        out = out + gb_ref[0] * res
    if use_clip:
        out = out + gb_ref[1] * clip_ref[0]
    out_ref[0] = out.astype(out_ref.dtype)


def _banded_row_operators(w_hwio, width):
    """(K, K, Ci, Co) HWIO conv weight -> (K, width*Ci, width*Co) banded mats.

    M[ky, xs*Ci + ci, x*Co + co] = w[ky, xs - x + K//2, ci, co] (0 otherwise):
    the kx taps, the channel mixing and the left/right zero padding of a
    stride-1 'same' conv become one per-ky row operator.
    """
    K, _, Ci, Co = w_hwio.shape
    m = jnp.zeros((K, width * Ci, width * Co), jnp.float32)
    for x in range(width):
        for kx in range(K):
            xs = x + kx - K // 2
            if 0 <= xs < width:
                m = m.at[:, xs * Ci:(xs + 1) * Ci, x * Co:(x + 1) * Co].set(
                    w_hwio[:, kx].astype(jnp.float32))
    return m


def _blockdiag_1x1(ws, width):
    """(Ci, Co) 1x1 conv weight -> (width*Ci, width*Co) block-diagonal mat."""
    Ci, Co = ws.shape
    m = jnp.zeros((width * Ci, width * Co), jnp.float32)
    for x in range(width):
        m = m.at[x * Ci:(x + 1) * Ci, x * Co:(x + 1) * Co].set(
            ws.astype(jnp.float32))
    return m


def d_block_forward(x_nchw, clip_nchw, w1, w2, ws, bs, gamma, beta,
                    *, res=True, clip_feat=True):
    """D_Block forward, NCHW in / NCHW out.  Assumes k=3, s=1, p=1."""
    # TODO(synk): general stride s>1 / k!=3 not implemented (needs different
    # banded row operators and strided row selection).
    N, Cin, H, W = x_nchw.shape
    K = w1.shape[0]
    Cout = w1.shape[-1]
    assert K == 3 and w1.shape[1] == 3
    learned_shortcut = Cin != Cout

    # Lane-dense activations: (N, H, W*C).
    x_dense = jnp.transpose(x_nchw, (0, 2, 3, 1)).reshape(N, H, W * Cin)
    if clip_feat and clip_nchw is not None:
        clip_dense = jnp.transpose(clip_nchw, (0, 2, 3, 1)).reshape(
            N, H, W * Cout)
    else:
        clip_dense = jnp.zeros((N, H, W * Cout), x_dense.dtype)

    m1 = _banded_row_operators(w1, W)                 # (K, W*Cin,  W*Cout)
    m2 = _banded_row_operators(w2, W)                 # (K, W*Cout, W*Cout)
    ms = _blockdiag_1x1(ws, W)                        # (W*Cin, W*Cout)
    brow = jnp.tile(bs.astype(jnp.float32), W).reshape(1, W * Cout)
    gb = jnp.stack([jnp.asarray(gamma, jnp.float32),
                    jnp.asarray(beta, jnp.float32)])

    kernel = functools.partial(
        _d_block_kernel, H=H, W=W, Cin=Cin, Cout=Cout, K=K,
        use_res=res, use_clip=clip_feat, learned_shortcut=learned_shortcut)

    flops = 2 * N * H * (W * Cin) * (W * Cout) * K        # conv_r[0]
    flops += 2 * N * H * (W * Cout) * (W * Cout) * K      # conv_r[2]
    flops += 2 * N * H * (W * Cin) * (W * Cout)           # 1x1 shortcut
    bytes_accessed = 4 * (x_dense.size + clip_dense.size + m1.size + m2.size
                          + ms.size + N * H * W * Cout)

    out_dense = pl.pallas_call(
        kernel,
        out_shape=jax.ShapeDtypeStruct((N, H, W * Cout), jnp.float32),
        grid=(N,),
        in_specs=[
            pl.BlockSpec((1, H, W * Cin), lambda n: (n, 0, 0)),          # x
            pl.BlockSpec((K, W * Cin, W * Cout), lambda n: (0, 0, 0)),   # m1
            pl.BlockSpec((K, W * Cout, W * Cout), lambda n: (0, 0, 0)),  # m2
            pl.BlockSpec((W * Cin, W * Cout), lambda n: (0, 0)),         # ms
            pl.BlockSpec((1, W * Cout), lambda n: (0, 0)),               # bias
            pl.BlockSpec(memory_space=pltpu.MemorySpace.SMEM),           # gb
            pl.BlockSpec((1, H, W * Cout), lambda n: (n, 0, 0)),         # clip
        ],
        out_specs=pl.BlockSpec((1, H, W * Cout), lambda n: (n, 0, 0)),
        scratch_shapes=[pltpu.VMEM((H, W * Cout), jnp.float32)],
        compiler_params=pltpu.CompilerParams(
            dimension_semantics=("parallel",),
            vmem_limit_bytes=32 * 1024 * 1024),
        cost_estimate=pl.CostEstimate(flops=int(flops), transcendentals=0,
                                      bytes_accessed=int(bytes_accessed)),
    )(x_dense, m1, m2, ms, brow, gb, clip_dense)

    # TODO(synk): for large H, also tile rows (carrying a 1-row halo through
    # overlapping blocks) instead of one whole-image block per batch element.
    return jnp.transpose(out_dense.reshape(N, H, W, Cout), (0, 3, 1, 2))


def d_block_reference(x_nchw, clip_nchw, w1, w2, ws, bs, gamma, beta,
                      *, res=True, clip_feat=True):
    """Pure-JAX reference mirroring the PyTorch forward (for validation)."""
    dn = ('NHWC', 'HWIO', 'NHWC')
    xn = jnp.transpose(x_nchw, (0, 2, 3, 1))
    h = lax.conv_general_dilated(xn, w1, (1, 1), ((1, 1), (1, 1)),
                                 dimension_numbers=dn)
    h = jnp.where(h > 0, h, 0.2 * h)
    h = lax.conv_general_dilated(h, w2, (1, 1), ((1, 1), (1, 1)),
                                 dimension_numbers=dn)
    r = jnp.where(h > 0, h, 0.2 * h)
    if x_nchw.shape[1] != w1.shape[-1]:
        xs = jnp.einsum('nhwc,co->nhwo', xn, ws) + bs
    else:
        xs = xn
    out = xs
    if res:
        out = out + gamma * r
    if clip_feat:
        out = out + beta * jnp.transpose(clip_nchw, (0, 2, 3, 1))
    return jnp.transpose(out, (0, 3, 1, 2))


if __name__ == "__main__":
    # D_Block(fin=4, fout=8, k=3, s=1, p=1, res=True, CLIP_feat=True)
    N, Cin, Cout, H, W, K = 2, 4, 8, 16, 16, 3

    key = jax.random.PRNGKey(0)
    k1, k2, k3, k4, k5, k6 = jax.random.split(key, 6)

    x = jax.random.normal(k1, (N, Cin, H, W), jnp.float32)            # NCHW input
    clip_feats = jax.random.normal(k2, (N, Cout, H, W), jnp.float32)  # CLIP_feat

    # Deterministic synthetic parameters (shapes from __init__), HWIO weights.
    w1 = 0.2 * jax.random.normal(k3, (K, K, Cin, Cout), jnp.float32)   # conv_r[0]
    w2 = 0.2 * jax.random.normal(k4, (K, K, Cout, Cout), jnp.float32)  # conv_r[2]
    ws = 0.2 * jax.random.normal(k5, (Cin, Cout), jnp.float32)         # conv_s w
    bs = 0.1 * jax.random.normal(k6, (Cout,), jnp.float32)             # conv_s b
    # gamma/beta are zero-initialized in the module; small nonzero values here
    # so every compute path is exercised.
    gamma, beta = 0.1, 0.2

    fwd = jax.jit(functools.partial(d_block_forward, res=True, clip_feat=True))
    out = jax.block_until_ready(fwd(x, clip_feats, w1, w2, ws, bs, gamma, beta))

    ref = d_block_reference(x, clip_feats, w1, w2, ws, bs, gamma, beta)
    assert out.shape == (N, Cout, H, W)
    assert jnp.allclose(out, ref, atol=1e-3, rtol=1e-3), (
        float(jnp.max(jnp.abs(out - ref))))

    print("KERNEL_OK")
</pallas_src>

<mosaic_0001>
module attributes {stable_mosaic.version = 11 : i64} {
  func.func @_d_block_kernel(%arg0: i32, %arg1: memref<1x16x64xf32, #tpu.memory_space<vmem>>, %arg2: memref<3x64x128xf32, #tpu.memory_space<vmem>>, %arg3: memref<3x128x128xf32, #tpu.memory_space<vmem>>, %arg4: memref<64x128xf32, #tpu.memory_space<vmem>>, %arg5: memref<1x128xf32, #tpu.memory_space<vmem>>, %arg6: memref<2xf32, #tpu.memory_space<smem>>, %arg7: memref<1x16x128xf32, #tpu.memory_space<vmem>>, %arg8: memref<1x16x128xf32, #tpu.memory_space<vmem>>, %arg9: memref<16x128xf32, #tpu.memory_space<vmem>>) attributes {dimension_semantics = [#tpu.dimension_semantics<parallel>], iteration_bounds = array<i64: 2>, scalar_prefetch = 0 : i64, scratch_operands = 1 : i64, tpu.core_type = #tpu.core_type<tc>, window_params = [{transform_indices = @transform_0, window_bounds = array<i64: 1, 16, 64>}, {pipeline_mode = #tpu.pipeline_mode<synchronous>, transform_indices = @transform_1, window_bounds = array<i64: 3, 64, 128>}, {pipeline_mode = #tpu.pipeline_mode<synchronous>, transform_indices = @transform_2, window_bounds = array<i64: 3, 128, 128>}, {pipeline_mode = #tpu.pipeline_mode<synchronous>, transform_indices = @transform_3, window_bounds = array<i64: 64, 128>}, {pipeline_mode = #tpu.pipeline_mode<synchronous>, transform_indices = @transform_4, window_bounds = array<i64: 1, 128>}, {transform_indices = @transform_5, window_bounds = array<i64: 2>}, {transform_indices = @transform_6, window_bounds = array<i64: 1, 16, 128>}, {transform_indices = @transform_7, window_bounds = array<i64: 1, 16, 128>}]} {
    %c0 = arith.constant 0 : index
    %c0_0 = arith.constant 0 : index
    %c0_1 = arith.constant 0 : index
    %0 = vector.load %arg1[%c0, %c0_0, %c0_1] : memref<1x16x64xf32, #tpu.memory_space<vmem>>, vector<1x16x64xf32>
    %1 = vector.shape_cast %0 : vector<1x16x64xf32> to vector<16x64xf32>
    %c1 = arith.constant 1 : index
    %c0_2 = arith.constant 0 : index
    %c0_3 = arith.constant 0 : index
    %2 = vector.load %arg2[%c1, %c0_2, %c0_3] : memref<3x64x128xf32, #tpu.memory_space<vmem>>, vector<1x64x128xf32>
    %3 = vector.shape_cast %2 : vector<1x64x128xf32> to vector<64x128xf32>
    %cst = arith.constant dense<0.000000e+00> : vector<16x128xf32>
    %4 = tpu.matmul %1, %3, %cst {dimension_numbers = #tpu.dot_dimension_numbers<[1], [0], [0], [1], [0, 0, 1, 1], [], []>} : vector<16x64xf32>, vector<64x128xf32>, vector<16x128xf32> -> vector<16x128xf32>
    %c0_4 = arith.constant 0 : index
    %c0_5 = arith.constant 0 : index
    %5 = vector.load %arg9[%c0_4, %c0_5] : memref<16x128xf32, #tpu.memory_space<vmem>>, vector<16x128xf32>
    tpu.vector_store %arg9[%c0_4, %c0_5], %4 {strides = array<i32>} : memref<16x128xf32, #tpu.memory_space<vmem>>, vector<16x128xf32>,
    %c1_6 = arith.constant 1 : index
    %c0_7 = arith.constant 0 : index
    %6 = vector.load %arg9[%c1_6, %c0_7] : memref<16x128xf32, #tpu.memory_space<vmem>>, vector<15x128xf32>
    %7 = vector.extract_strided_slice %1 {offsets = [0, 0], sizes = [15, 64], strides = [1, 1]} : vector<16x64xf32> to vector<15x64xf32>
    %c0_8 = arith.constant 0 : index
    %c0_9 = arith.constant 0 : index
    %c0_10 = arith.constant 0 : index
    %8 = vector.load %arg2[%c0_8, %c0_9, %c0_10] : memref<3x64x128xf32, #tpu.memory_space<vmem>>, vector<1x64x128xf32>
    %9 = vector.shape_cast %8 : vector<1x64x128xf32> to vector<64x128xf32>
    %cst_11 = arith.constant dense<0.000000e+00> : vector<15x128xf32>
    %10 = tpu.matmul %7, %9, %cst_11 {dimension_numbers = #tpu.dot_dimension_numbers<[1], [0], [0], [1], [0, 0, 1, 1], [], []>} : vector<15x64xf32>, vector<64x128xf32>, vector<15x128xf32> -> vector<15x128xf32>
    %11 = arith.addf %6, %10 : vector<15x128xf32>
    %c1_12 = arith.constant 1 : index
    %c0_13 = arith.constant 0 : index
    %12 = vector.load %arg9[%c1_12, %c0_13] : memref<16x128xf32, #tpu.memory_space<vmem>>, vector<15x128xf32>
    tpu.vector_store %arg9[%c1_12, %c0_13], %11 {strides = array<i32>} : memref<16x128xf32, #tpu.memory_space<vmem>>, vector<15x128xf32>,
    %c0_14 = arith.constant 0 : index
    %c0_15 = arith.constant 0 : index
    %13 = vector.load %arg9[%c0_14, %c0_15] : memref<16x128xf32, #tpu.memory_space<vmem>>, vector<15x128xf32>
    %14 = vector.extract_strided_slice %1 {offsets = [1, 0], sizes = [15, 64], strides = [1, 1]} : vector<16x64xf32> to vector<15x64xf32>
    %c2 = arith.constant 2 : index
    %c0_16 = arith.constant 0 : index
    %c0_17 = arith.constant 0 : index
    %15 = vector.load %arg2[%c2, %c0_16, %c0_17] : memref<3x64x128xf32, #tpu.memory_space<vmem>>, vector<1x64x128xf32>
    %16 = vector.shape_cast %15 : vector<1x64x128xf32> to vector<64x128xf32>
    %cst_18 = arith.constant dense<0.000000e+00> : vector<15x128xf32>
    %17 = tpu.matmul %14, %16, %cst_18 {dimension_numbers = #tpu.dot_dimension_numbers<[1], [0], [0], [1], [0, 0, 1, 1], [], []>} : vector<15x64xf32>, vector<64x128xf32>, vector<15x128xf32> -> vector<15x128xf32>
    %18 = arith.addf %13, %17 : vector<15x128xf32>
    %c0_19 = arith.constant 0 : index
    %c0_20 = arith.constant 0 : index
    %19 = vector.load %arg9[%c0_19, %c0_20] : memref<16x128xf32, #tpu.memory_space<vmem>>, vector<15x128xf32>
    tpu.vector_store %arg9[%c0_19, %c0_20], %18 {strides = array<i32>} : memref<16x128xf32, #tpu.memory_space<vmem>>, vector<15x128xf32>,
    %c0_21 = arith.constant 0 : index
    %c0_22 = arith.constant 0 : index
    %20 = vector.load %arg9[%c0_21, %c0_22] : memref<16x128xf32, #tpu.memory_space<vmem>>, vector<16x128xf32>
    %cst_23 = arith.constant 0.000000e+00 : f32
    %21 = vector.broadcast %cst_23 : f32 to vector<16x128xf32>
    %22 = arith.cmpf ogt, %20, %21 : vector<16x128xf32>
    %cst_24 = arith.constant 2.000000e-01 : f32
    %23 = vector.broadcast %cst_24 : f32 to vector<16x128xf32>
    %24 = arith.mulf %23, %20 : vector<16x128xf32>
    %25 = arith.select %22, %20, %24 : vector<16x128xi1>, vector<16x128xf32>
    %c1_25 = arith.constant 1 : index
    %c0_26 = arith.constant 0 : index
    %c0_27 = arith.constant 0 : index
    %26 = vector.load %arg3[%c1_25, %c0_26, %c0_27] : memref<3x128x128xf32, #tpu.memory_space<vmem>>, vector<1x128x128xf32>
    %27 = vector.shape_cast %26 : vector<1x128x128xf32> to vector<128x128xf32>
    %cst_28 = arith.constant dense<0.000000e+00> : vector<16x128xf32>
    %28 = tpu.matmul %25, %27, %cst_28 {dimension_numbers = #tpu.dot_dimension_numbers<[1], [0], [0], [1], [0, 0, 1, 1], [], []>} : vector<16x128xf32>, vector<128x128xf32>, vector<16x128xf32> -> vector<16x128xf32>
    %c0_29 = arith.constant 0 : index
    %c0_30 = arith.constant 0 : index
    %29 = vector.load %arg9[%c0_29, %c0_30] : memref<16x128xf32, #tpu.memory_space<vmem>>, vector<16x128xf32>
    tpu.vector_store %arg9[%c0_29, %c0_30], %28 {strides = array<i32>} : memref<16x128xf32, #tpu.memory_space<vmem>>, vector<16x128xf32>,
    %c1_31 = arith.constant 1 : index
    %c0_32 = arith.constant 0 : index
    %30 = vector.load %arg9[%c1_31, %c0_32] : memref<16x128xf32, #tpu.memory_space<vmem>>, vector<15x128xf32>
    %31 = vector.extract_strided_slice %25 {offsets = [0, 0], sizes = [15, 128], strides = [1, 1]} : vector<16x128xf32> to vector<15x128xf32>
    %c0_33 = arith.constant 0 : index
    %c0_34 = arith.constant 0 : index
    %c0_35 = arith.constant 0 : index
    %32 = vector.load %arg3[%c0_33, %c0_34, %c0_35] : memref<3x128x128xf32, #tpu.memory_space<vmem>>, vector<1x128x128xf32>
    %33 = vector.shape_cast %32 : vector<1x128x128xf32> to vector<128x128xf32>
    %cst_36 = arith.constant dense<0.000000e+00> : vector<15x128xf32>
    %34 = tpu.matmul %31, %33, %cst_36 {dimension_numbers = #tpu.dot_dimension_numbers<[1], [0], [0], [1], [0, 0, 1, 1], [], []>} : vector<15x128xf32>, vector<128x128xf32>, vector<15x128xf32> -> vector<15x128xf32>
    %35 = arith.addf %30, %34 : vector<15x128xf32>
    %c1_37 = arith.constant 1 : index
    %c0_38 = arith.constant 0 : index
    %36 = vector.load %arg9[%c1_37, %c0_38] : memref<16x128xf32, #tpu.memory_space<vmem>>, vector<15x128xf32>
    tpu.vector_store %arg9[%c1_37, %c0_38], %35 {strides = array<i32>} : memref<16x128xf32, #tpu.memory_space<vmem>>, vector<15x128xf32>,
    %c0_39 = arith.constant 0 : index
    %c0_40 = arith.constant 0 : index
    %37 = vector.load %arg9[%c0_39, %c0_40] : memref<16x128xf32, #tpu.memory_space<vmem>>, vector<15x128xf32>
    %38 = vector.extract_strided_slice %25 {offsets = [1, 0], sizes = [15, 128], strides = [1, 1]} : vector<16x128xf32> to vector<15x128xf32>
    %c2_41 = arith.constant 2 : index
    %c0_42 = arith.constant 0 : index
    %c0_43 = arith.constant 0 : index
    %39 = vector.load %arg3[%c2_41, %c0_42, %c0_43] : memref<3x128x128xf32, #tpu.memory_space<vmem>>, vector<1x128x128xf32>
    %40 = vector.shape_cast %39 : vector<1x128x128xf32> to vector<128x128xf32>
    %cst_44 = arith.constant dense<0.000000e+00> : vector<15x128xf32>
    %41 = tpu.matmul %38, %40, %cst_44 {dimension_numbers = #tpu.dot_dimension_numbers<[1], [0], [0], [1], [0, 0, 1, 1], [], []>} : vector<15x128xf32>, vector<128x128xf32>, vector<15x128xf32> -> vector<15x128xf32>
    %42 = arith.addf %37, %41 : vector<15x128xf32>
    %c0_45 = arith.constant 0 : index
    %c0_46 = arith.constant 0 : index
    %43 = vector.load %arg9[%c0_45, %c0_46] : memref<16x128xf32, #tpu.memory_space<vmem>>, vector<15x128xf32>
    tpu.vector_store %arg9[%c0_45, %c0_46], %42 {strides = array<i32>} : memref<16x128xf32, #tpu.memory_space<vmem>>, vector<15x128xf32>,
    %c0_47 = arith.constant 0 : index
    %c0_48 = arith.constant 0 : index
    %44 = vector.load %arg9[%c0_47, %c0_48] : memref<16x128xf32, #tpu.memory_space<vmem>>, vector<16x128xf32>
    %cst_49 = arith.constant 0.000000e+00 : f32
    %45 = vector.broadcast %cst_49 : f32 to vector<16x128xf32>
    %46 = arith.cmpf ogt, %44, %45 : vector<16x128xf32>
    %cst_50 = arith.constant 2.000000e-01 : f32
    %47 = vector.broadcast %cst_50 : f32 to vector<16x128xf32>
    %48 = arith.mulf %47, %44 : vector<16x128xf32>
    %49 = arith.select %46, %44, %48 : vector<16x128xi1>, vector<16x128xf32>
    %c0_51 = arith.constant 0 : index
    %c0_52 = arith.constant 0 : index
    %50 = vector.load %arg4[%c0_51, %c0_52] : memref<64x128xf32, #tpu.memory_space<vmem>>, vector<64x128xf32>
    %cst_53 = arith.constant dense<0.000000e+00> : vector<16x128xf32>
    %51 = tpu.matmul %1, %50, %cst_53 {dimension_numbers = #tpu.dot_dimension_numbers<[1], [0], [0], [1], [0, 0, 1, 1], [], []>} : vector<16x64xf32>, vector<64x128xf32>, vector<16x128xf32> -> vector<16x128xf32>
    %c0_54 = arith.constant 0 : index
    %c0_55 = arith.constant 0 : index
    %52 = vector.load %arg5[%c0_54, %c0_55] : memref<1x128xf32, #tpu.memory_space<vmem>>, vector<1x128xf32>
    %53 = vector.broadcast %52 : vector<1x128xf32> to vector<16x128xf32>
    %54 = arith.addf %51, %53 : vector<16x128xf32>
    %c0_56 = arith.constant 0 : index
    %55 = memref.load %arg6[%c0_56] : memref<2xf32, #tpu.memory_space<smem>>
    %56 = vector.broadcast %55 : f32 to vector<16x128xf32>
    %57 = arith.mulf %56, %49 : vector<16x128xf32>
    %58 = arith.addf %54, %57 : vector<16x128xf32>
    %c1_57 = arith.constant 1 : index
    %59 = memref.load %arg6[%c1_57] : memref<2xf32, #tpu.memory_space<smem>>
    %c0_58 = arith.constant 0 : index
    %c0_59 = arith.constant 0 : index
    %c0_60 = arith.constant 0 : index
    %60 = vector.load %arg7[%c0_58, %c0_59, %c0_60] : memref<1x16x128xf32, #tpu.memory_space<vmem>>, vector<1x16x128xf32>
    %61 = vector.shape_cast %60 : vector<1x16x128xf32> to vector<16x128xf32>
    %62 = vector.broadcast %59 : f32 to vector<16x128xf32>
    %63 = arith.mulf %62, %61 : vector<16x128xf32>
    %64 = arith.addf %58, %63 : vector<16x128xf32>
    %c0_61 = arith.constant 0 : index
    %c0_62 = arith.constant 0 : index
    %c0_63 = arith.constant 0 : index
    %65 = vector.load %arg8[%c0_61, %c0_62, %c0_63] : memref<1x16x128xf32, #tpu.memory_space<vmem>>, vector<1x16x128xf32>
    %66 = vector.shape_cast %65 : vector<1x16x128xf32> to vector<16x128xf32>
    %67 = vector.shape_cast %64 : vector<16x128xf32> to vector<1x16x128xf32>
    tpu.vector_store %arg8[%c0_61, %c0_62, %c0_63], %67 {strides = array<i32>} : memref<1x16x128xf32, #tpu.memory_space<vmem>>, vector<1x16x128xf32>,
    return
  }
  func.func @transform_0(%arg0: i32) -> (i32, i32, i32) {
    %c0_i32 = arith.constant 0 : i32
    %c0_i32_0 = arith.constant 0 : i32
    %c0_i32_1 = arith.constant 0 : i32
    return %arg0, %c0_i32, %c0_i32_0 : i32, i32, i32
  }
  func.func @transform_1(%arg0: i32) -> (i32, i32, i32) {
    %c0_i32 = arith.constant 0 : i32
    %c0_i32_0 = arith.constant 0 : i32
    %c0_i32_1 = arith.constant 0 : i32
    %c0_i32_2 = arith.constant 0 : i32
    return %c0_i32, %c0_i32_0, %c0_i32_1 : i32, i32, i32
  }
  func.func @transform_2(%arg0: i32) -> (i32, i32, i32) {
    %c0_i32 = arith.constant 0 : i32
    %c0_i32_0 = arith.constant 0 : i32
    %c0_i32_1 = arith.constant 0 : i32
    %c0_i32_2 = arith.constant 0 : i32
    return %c0_i32, %c0_i32_0, %c0_i32_1 : i32, i32, i32
  }
  func.func @transform_3(%arg0: i32) -> (i32, i32) {
    %c0_i32 = arith.constant 0 : i32
    %c0_i32_0 = arith.constant 0 : i32
    %c0_i32_1 = arith.constant 0 : i32
    return %c0_i32, %c0_i32_0 : i32, i32
  }
  func.func @transform_4(%arg0: i32) -> (i32, i32) {
    %c0_i32 = arith.constant 0 : i32
    %c0_i32_0 = arith.constant 0 : i32
    %c0_i32_1 = arith.constant 0 : i32
    return %c0_i32, %c0_i32_0 : i32, i32
  }
  func.func @transform_5(%arg0: i32) -> i32 {
    %c0_i32 = arith.constant 0 : i32
    %c0_i32_0 = arith.constant 0 : i32
    return %c0_i32 : i32
  }
  func.func @transform_6(%arg0: i32) -> (i32, i32, i32) {
    %c0_i32 = arith.constant 0 : i32
    %c0_i32_0 = arith.constant 0 : i32
    %c0_i32_1 = arith.constant 0 : i32
    return %arg0, %c0_i32, %c0_i32_0 : i32, i32, i32
  }
  func.func @transform_7(%arg0: i32) -> (i32, i32, i32) {
    %c0_i32 = arith.constant 0 : i32
    %c0_i32_0 = arith.constant 0 : i32
    %c0_i32_1 = arith.constant 0 : i32
    return %arg0, %c0_i32, %c0_i32_0 : i32, i32, i32
  }
}

</mosaic_0001>

<llo_original>
// kernel: tile.8
$region0: #{tile.8}
  #allocation0 [shape = 's32[1]{0}', space=sflag, size = 0x4, scoped, tag = 'scoped memory for tile.8']
  %s0 = inlined_call_operand.vmem [shape: f32[8], index: 0, kind: input, shape index: {}]
  %s1 = inlined_call_operand.vmem [shape: f32[16,8], index: 1, kind: output, shape index: {}]
  // Predicated region
  $region2: #{tile.8} parent=0 // pred_check
    _
  $region3: #{tile.8} parent=0 // pred_check_branch
    %3 = sbr.rel (0) target = $region5
  $region4: #{tile.8} parent=0 // pred_region
    _
  $region5: #{tile.8} parent=0 // pred_fallthru
    _
  %v4 = vld [vmem:[%s0] ss:$0 sm:$0xff]
  %5 = vst [vmem:[%s1] sm:$0xff] %v4
  %s6 = scalar_lea.vmem %s1, 8
  %7 = vst [vmem:[%s6] sm:$0xff] %v4

// kernel: tile.9
$region0: #{tile.9}
  %s0 = inlined_call_operand.vmem [shape: f32[16,8], index: 0, kind: input, shape index: {}]
  %s1 = inlined_call_operand.vmem [shape: f32[1,128], index: 1, kind: output, shape index: {}]
  $region1: #{tile.9} parent=0
    #allocation0 [shape = 'u8[4096]{0}', space=vmem, size = 0x1000, scoped, tag = 'scoped mem for output reshape']
    %v2 = vld [vmem:[%s0] sm:$0x1]
    %vm3 = vcmask 64512
    %4 = vst.msk [vmem:[#allocation0] sm:$0x1] %vm3, %v2
    %s5 = scalar_lea.vmem %s0, 15
    %v6 = vld [vmem:[%s5] sm:$0x1]
    %7 = vrot.lane.b32.xlu0 %v6, 120
    %v8 = vpop.permute.xlu0 %7
    %vm9 = vcmask 1048512
    %10 = vst.msk [vmem:[#allocation0] sm:$0x1] %vm9, %v8
    %s11 = scalar_lea.vmem %s0, 14
    %v12 = vld [vmem:[%s11] sm:$0x1]
    %13 = vrot.lane.b32.xlu0 %v12, 112
    %v14 = vpop.permute.xlu0 %13
    %vm15 = vcmask 982912
    %16 = vst.msk [vmem:[#allocation0] sm:$0x1] %vm15, %v14
    %s17 = scalar_lea.vmem %s0, 13
    %v18 = vld [vmem:[%s17] sm:$0x1]
    %19 = vrot.lane.b32.xlu0 %v18, 104
    %v20 = vpop.permute.xlu0 %19
    %vm21 = vcmask 917312
    %22 = vst.msk [vmem:[#allocation0] sm:$0x1] %vm21, %v20
    %s23 = scalar_lea.vmem %s0, 12
    %v24 = vld [vmem:[%s23] sm:$0x1]
    %25 = vrot.lane.b32.xlu0 %v24, 96
    %v26 = vpop.permute.xlu0 %25
    %vm27 = vcmask 851712
    %28 = vst.msk [vmem:[#allocation0] sm:$0x1] %vm27, %v26
    %s29 = scalar_lea.vmem %s0, 11
    %v30 = vld [vmem:[%s29] sm:$0x1]
    %31 = vrot.lane.b32.xlu0 %v30, 88
    %v32 = vpop.permute.xlu0 %31
    %vm33 = vcmask 786112
    %34 = vst.msk [vmem:[#allocation0] sm:$0x1] %vm33, %v32
    %s35 = scalar_lea.vmem %s0, 10
    %v36 = vld [vmem:[%s35] sm:$0x1]
    %37 = vrot.lane.b32.xlu0 %v36, 80
    %v38 = vpop.permute.xlu0 %37
    %vm39 = vcmask 720512
    %40 = vst.msk [vmem:[#allocation0] sm:$0x1] %vm39, %v38
    %s41 = scalar_lea.vmem %s0, 9
    %v42 = vld [vmem:[%s41] sm:$0x1]
    %43 = vrot.lane.b32.xlu0 %v42, 72
    %v44 = vpop.permute.xlu0 %43
    %vm45 = vcmask 654912
    %46 = vst.msk [vmem:[#allocation0] sm:$0x1] %vm45, %v44
    %s47 = scalar_lea.vmem %s0, 8
    %v48 = vld [vmem:[%s47] sm:$0x1]
    %49 = vrot.lane.b32.xlu0 %v48, 64
    %v50 = vpop.permute.xlu0 %49
    %vm51 = vcmask 589312
    %52 = vst.msk [vmem:[#allocation0] sm:$0x1] %vm51, %v50
    %s53 = scalar_lea.vmem %s0, 7
    %v54 = vld [vmem:[%s53] sm:$0x1]
    %55 = vrot.lane.b32.xlu0 %v54, 56
    %v56 = vpop.permute.xlu0 %55
    %vm57 = vcmask 523712
    %58 = vst.msk [vmem:[#allocation0] sm:$0x1] %vm57, %v56
    %s59 = scalar_lea.vmem %s0, 6
    %v60 = vld [vmem:[%s59] sm:$0x1]
    %61 = vrot.lane.b32.xlu0 %v60, 48
    %v62 = vpop.permute.xlu0 %61
    %vm63 = vcmask 458112
    %64 = vst.msk [vmem:[#allocation0] sm:$0x1] %vm63, %v62
    %s65 = scalar_lea.vmem %s0, 5
    %v66 = vld [vmem:[%s65] sm:$0x1]
    %67 = vrot.lane.b32.xlu0 %v66, 40
    %v68 = vpop.permute.xlu0 %67
    %vm69 = vcmask 392512
    %70 = vst.msk [vmem:[#allocation0] sm:$0x1] %vm69, %v68
    %s71 = scalar_lea.vmem %s0, 4
    %v72 = vld [vmem:[%s71] sm:$0x1]
    %73 = vrot.lane.b32.xlu0 %v72, 32
    %v74 = vpop.permute.xlu0 %73
    %vm75 = vcmask 326912
    %76 = vst.msk [vmem:[#allocation0] sm:$0x1] %vm75, %v74
    %s77 = scalar_lea.vmem %s0, 3
    %v78 = vld [vmem:[%s77] sm:$0x1]
    %79 = vrot.lane.b32.xlu0 %v78, 24
    %v80 = vpop.permute.xlu0 %79
    %vm81 = vcmask 261312
    %82 = vst.msk [vmem:[#allocation0] sm:$0x1] %vm81, %v80
    %s83 = scalar_lea.vmem %s0, 2
    %v84 = vld [vmem:[%s83] sm:$0x1]
    %85 = vrot.lane.b32.xlu0 %v84, 16
    %v86 = vpop.permute.xlu0 %85
    %vm87 = vcmask 195712
    %88 = vst.msk [vmem:[#allocation0] sm:$0x1] %vm87, %v86
    %s89 = scalar_lea.vmem %s0, 1
    %v90 = vld [vmem:[%s89] sm:$0x1]
    %91 = vrot.lane.b32.xlu0 %v90, 8
    %v92 = vpop.permute.xlu0 %91
    %vm93 = vcmask 130112
    %94 = vst.msk [vmem:[#allocation0] sm:$0x1] %vm93, %v92
    %s96 = sshll.u32 1, 1
    %s97 = ssub.s32 %s96, 1
    %v99 = vld [vmem:[#allocation0] sm:%s97]
    %s100 = sshll.u32 1, 1
    %s101 = ssub.s32 %s100, 1
    %102 = vst [vmem:[%s1] sm:%s101] %v99

// kernel: d_block_forward.1
$region0: #{d_block_forward.1}
  #allocation0 [shape = 'u32[]', space=smem, size = 0x4, offset = 0x4, fixed_abs, tag = 'smem constant byte address 0x4 - core index']
  #allocation1 [shape = 'u32[144,128]{1,0:T(1,128)}', space=vmem, size = 0x12000, scoped, tag = 'internal scratch']
  #allocation2 [shape = 'f32[16,128]{1,0:T(8,128)}', space=vmem, size = 0x2000, scoped, tag = 'scratch operand']
  %s0 = inlined_call_operand.vmem [shape: f32[2,16,64], index: 0, kind: input, shape index: {}]
  %s1 = inlined_call_operand.vmem [shape: f32[3,64,128], index: 1, kind: input, shape index: {}]
  %s2 = inlined_call_operand.vmem [shape: f32[3,128,128], index: 2, kind: input, shape index: {}]
  %s3 = inlined_call_operand.vmem [shape: f32[64,128], index: 3, kind: input, shape index: {}]
  %s4 = inlined_call_operand.vmem [shape: f32[1,128], index: 4, kind: input, shape index: {}]
  %s5 = inlined_call_operand.vmem [shape: f32[2], index: 5, kind: input, shape index: {}]
  %s6 = inlined_call_operand.vmem [shape: f32[2,16,128], index: 6, kind: input, shape index: {}]
  %s7 = inlined_call_operand.vmem [shape: f32[2,16,128], index: 7, kind: output, shape index: {}]
  %s8 = sld [smem:[#allocation0]]
  $region65: #{d_block_forward.1} parent=0
    _
  %s10 = ssub.s32 1, %s8
  %s11 = scalar_select 0, %s10, %s8
  $region1: #{d_block_forward.1} parent=0
    #allocation3 [shape = 'u8[512]{0}', space=smem, size = 0x200, scoped, tag = 'input window, operand 5, single buffered']
    #allocation4 [shape = 's32[2]{0}', space=sflag, size = 0x8, scoped, tag = 'scoped memory for d_block_forward.1']
    %12 = vsyncpa [#allocation4], 0
    loop: start=0, step=1, limit=4
    $region2: #{d_block_forward.1} parent=1 // loop_pre_header
      _
    $region3: #{d_block_forward.1} parent=1 // loop_header
      %s14 = sphi 0, %s18
      %p15 = scmp.ge.s32.totalorder %s14, 4
      %s24 = sphi 0, %s26
      %s27 = sphi 0, %s24
      %s28 = sphi 0, %s27
      %s44 = sphi 0, %s28
      %s48 = sphi 0, %s48
      %s50 = sphi 0, %s48
      %s51 = sphi 0, %s50
      %s65 = sphi 0, %s51
      %s69 = sphi 0, %s69
      %s71 = sphi 0, %s69
      %s72 = sphi 0, %s71
      %s86 = sphi 0, %s72
      %s90 = sphi 0, %s90
      %s92 = sphi 0, %s90
      %s93 = sphi 0, %s92
      %s107 = sphi 0, %s93
      %s111 = sphi 0, %s111
      %s113 = sphi 0, %s111
      %s114 = sphi 0, %s113
      %s128 = sphi 0, %s114
      %s132 = sphi 0, %s132
      %s134 = sphi 0, %s132
      %s135 = sphi 0, %s134
      %s149 = sphi 0, %s135
      %s155 = sphi 0, %s157
      %s158 = sphi 0, %s155
      %s159 = sphi 0, %s158
      %s175 = sphi 0, %s159
      %s181 = sphi 0, %s183
      %s184 = sphi 0, %s181
      %s185 = sphi 0, %s184
      %s201 = sphi 0, %s185
    $region4: #{d_block_forward.1} parent=1 // loop_header_branch
      %17 = sbr.rel (%p15) target = $region8
    $region5: #{d_block_forward.1} parent=1 // loop_body
      %s19 = ssub.s32 %s14, 1
      %s20 = ssub.s32 %s14, 2
      %s21 = sadd.s32 %s14, 1
      %s22 = ssub.s32 %s14, %s21
      %p23 = scmp.eq.s32.totalorder %s22, 0
      %s25 = sadd.s32 %s24, 1
      %s26 = scalar_select %p23, %s24, %s25
      %p29 = pneg %p23
      %p30 = scmp.eq.s32.totalorder %s14, 1
      %p31 = por %p29, %p30
      %p32 = scmp.ne.s32.totalorder %s24, %s27
      %p33 = scmp.eq.s32.totalorder %s14, 0
      %p34 = por %p32, %p33
      %p35 = scmp.ne.s32.totalorder %s24, %s27
      %p36 = scmp.eq.s32.totalorder %s19, 1
      %p37 = por %p35, %p36
      %p38 = scmp.ne.s32.totalorder %s27, %s28
      %p39 = scmp.eq.s32.totalorder %s19, 0
      %p40 = por %p38, %p39
      %p41 = scmp.ne.s32.totalorder %s27, %s28
      %p42 = scmp.eq.s32.totalorder %s20, 1
      %p43 = por %p41, %p42
      %p45 = scmp.ne.s32.totalorder %s28, %s44
      %p46 = scmp.eq.s32.totalorder %s20, 0
      %p47 = por %p45, %p46
      %s49 = sadd.s32 %s48, 1
      %p52 = scmp.eq.s32.totalorder %s14, 1
      %p53 = scmp.ne.s32.totalorder %s48, %s50
      %p54 = scmp.eq.s32.totalorder %s14, 0
      %p55 = por %p53, %p54
      %p56 = scmp.ne.s32.totalorder %s48, %s50
      %p57 = scmp.eq.s32.totalorder %s19, 1
      %p58 = por %p56, %p57
      %p59 = scmp.ne.s32.totalorder %s50, %s51
      %p60 = scmp.eq.s32.totalorder %s19, 0
      %p61 = por %p59, %p60
      %p62 = scmp.ne.s32.totalorder %s50, %s51
      %p63 = scmp.eq.s32.totalorder %s20, 1
      %p64 = por %p62, %p63
      %p66 = scmp.ne.s32.totalorder %s51, %s65
      %p67 = scmp.eq.s32.totalorder %s20, 0
      %p68 = por %p66, %p67
      %s70 = sadd.s32 %s69, 1
      %p73 = scmp.eq.s32.totalorder %s14, 1
      %p74 = scmp.ne.s32.totalorder %s69, %s71
      %p75 = scmp.eq.s32.totalorder %s14, 0
      %p76 = por %p74, %p75
      %p77 = scmp.ne.s32.totalorder %s69, %s71
      %p78 = scmp.eq.s32.totalorder %s19, 1
      %p79 = por %p77, %p78
      %p80 = scmp.ne.s32.totalorder %s71, %s72
      %p81 = scmp.eq.s32.totalorder %s19, 0
      %p82 = por %p80, %p81
      %p83 = scmp.ne.s32.totalorder %s71, %s72
      %p84 = scmp.eq.s32.totalorder %s20, 1
      %p85 = por %p83, %p84
      %p87 = scmp.ne.s32.totalorder %s72, %s86
      %p88 = scmp.eq.s32.totalorder %s20, 0
      %p89 = por %p87, %p88
      %s91 = sadd.s32 %s90, 1
      %p94 = scmp.eq.s32.totalorder %s14, 1
      %p95 = scmp.ne.s32.totalorder %s90, %s92
      %p96 = scmp.eq.s32.totalorder %s14, 0
      %p97 = por %p95, %p96
      %p98 = scmp.ne.s32.totalorder %s90, %s92
      %p99 = scmp.eq.s32.totalorder %s19, 1
      %p100 = por %p98, %p99
      %p101 = scmp.ne.s32.totalorder %s92, %s93
      %p102 = scmp.eq.s32.totalorder %s19, 0
      %p103 = por %p101, %p102
      %p104 = scmp.ne.s32.totalorder %s92, %s93
      %p105 = scmp.eq.s32.totalorder %s20, 1
      %p106 = por %p104, %p105
      %p108 = scmp.ne.s32.totalorder %s93, %s107
      %p109 = scmp.eq.s32.totalorder %s20, 0
      %p110 = por %p108, %p109
      %s112 = sadd.s32 %s111, 1
      %p115 = scmp.eq.s32.totalorder %s14, 1
      %p116 = scmp.ne.s32.totalorder %s111, %s113
      %p117 = scmp.eq.s32.totalorder %s14, 0
      %p118 = por %p116, %p117
      %p119 = scmp.ne.s32.totalorder %s111, %s113
      %p120 = scmp.eq.s32.totalorder %s19, 1
      %p121 = por %p119, %p120
      %p122 = scmp.ne.s32.totalorder %s113, %s114
      %p123 = scmp.eq.s32.totalorder %s19, 0
      %p124 = por %p122, %p123
      %p125 = scmp.ne.s32.totalorder %s113, %s114
      %p126 = scmp.eq.s32.totalorder %s20, 1
      %p127 = por %p125, %p126
      %p129 = scmp.ne.s32.totalorder %s114, %s128
      %p130 = scmp.eq.s32.totalorder %s20, 0
      %p131 = por %p129, %p130
      %s133 = sadd.s32 %s132, 1
      %p136 = scmp.eq.s32.totalorder %s14, 1
      %p137 = scmp.ne.s32.totalorder %s132, %s134
      %p138 = scmp.eq.s32.totalorder %s14, 0
      %p139 = por %p137, %p138
      %p140 = scmp.ne.s32.totalorder %s132, %s134
      %p141 = scmp.eq.s32.totalorder %s19, 1
      %p142 = por %p140, %p141
      %p143 = scmp.ne.s32.totalorder %s134, %s135
      %p144 = scmp.eq.s32.totalorder %s19, 0
      %p145 = por %p143, %p144
      %p146 = scmp.ne.s32.totalorder %s134, %s135
      %p147 = scmp.eq.s32.totalorder %s20, 1
      %p148 = por %p146, %p147
      %p150 = scmp.ne.s32.totalorder %s135, %s149
      %p151 = scmp.eq.s32.totalorder %s20, 0
      %p152 = por %p150, %p151
      %s153 = ssub.s32 %s14, %s21
      %p154 = scmp.eq.s32.totalorder %s153, 0
      %s156 = sadd.s32 %s155, 1
      %s157 = scalar_select %p154, %s155, %s156
      %p160 = pneg %p154
      %p161 = scmp.eq.s32.totalorder %s14, 1
      %p162 = por %p160, %p161
      %p163 = scmp.ne.s32.totalorder %s155, %s158
      %p164 = scmp.eq.s32.totalorder %s14, 0
      %p165 = por %p163, %p164
      %p166 = scmp.ne.s32.totalorder %s155, %s158
      %p167 = scmp.eq.s32.totalorder %s19, 1
      %p168 = por %p166, %p167
      %p169 = scmp.ne.s32.totalorder %s158, %s159
      %p170 = scmp.eq.s32.totalorder %s19, 0
      %p171 = por %p169, %p170
      %p172 = scmp.ne.s32.totalorder %s158, %s159
      %p173 = scmp.eq.s32.totalorder %s20, 1
      %p174 = por %p172, %p173
      %p176 = scmp.ne.s32.totalorder %s159, %s175
      %p177 = scmp.eq.s32.totalorder %s20, 0
      %p178 = por %p176, %p177
      %s179 = ssub.s32 %s14, %s21
      %p180 = scmp.eq.s32.totalorder %s179, 0
      %s182 = sadd.s32 %s181, 1
      %s183 = scalar_select %p180, %s181, %s182
      %p186 = pneg %p180
      %p187 = scmp.eq.s32.totalorder %s14, 1
      %p188 = por %p186, %p187
      %p189 = scmp.ne.s32.totalorder %s181, %s184
      %p190 = scmp.eq.s32.totalorder %s14, 0
      %p191 = por %p189, %p190
      %p192 = scmp.ne.s32.totalorder %s181, %s184
      %p193 = scmp.eq.s32.totalorder %s19, 1
      %p194 = por %p192, %p193
      %p195 = scmp.ne.s32.totalorder %s184, %s185
      %p196 = scmp.eq.s32.totalorder %s19, 0
      %p197 = por %p195, %p196
      %p198 = scmp.ne.s32.totalorder %s184, %s185
      %p199 = scmp.eq.s32.totalorder %s20, 1
      %p200 = por %p198, %p199
      %p202 = scmp.ne.s32.totalorder %s185, %s201
      %p203 = scmp.eq.s32.totalorder %s20, 0
      %p204 = por %p202, %p203
      %p205 = scmp.le.s32.totalorder 1, %s14
      %p206 = scmp.lt.s32.totalorder %s14, 3
      %p207 = pnand %p205, %p206
      %p208 = pneg %p207
      // Predicated region
      $region9: #{d_block_forward.1} parent=5 // pred_check
        _
      $region10: #{d_block_forward.1} parent=5 // pred_check_branch
        %210 = sbr.rel (%p207) target = $region12
      $region11: #{d_block_forward.1} parent=5 // pred_region
        %s211 = ssub.s32 %s14, 1
        // Predicated region
        $region13: #{d_block_forward.1} parent=11 // pred_check
          %p212 = pneg %p61
        $region14: #{d_block_forward.1} parent=11 // pred_check_branch
          %214 = sbr.rel (%p212) target = $region16
        $region15: #{d_block_forward.1} parent=11 // pred_region
          _
        $region16: #{d_block_forward.1} parent=11 // pred_fallthru
          _
        // Predicated region
        $region17: #{d_block_forward.1} parent=11 // pred_check
          %p215 = pneg %p82
        $region18: #{d_block_forward.1} parent=11 // pred_check_branch
          %217 = sbr.rel (%p215) target = $region20
        $region19: #{d_block_forward.1} parent=11 // pred_region
          _
        $region20: #{d_block_forward.1} parent=11 // pred_fallthru
          _
        // Predicated region
        $region21: #{d_block_forward.1} parent=11 // pred_check
          %p218 = pneg %p103
        $region22: #{d_block_forward.1} parent=11 // pred_check_branch
          %220 = sbr.rel (%p218) target = $region24
        $region23: #{d_block_forward.1} parent=11 // pred_region
          _
        $region24: #{d_block_forward.1} parent=11 // pred_fallthru
          _
        // Predicated region
        $region25: #{d_block_forward.1} parent=11 // pred_check
          %p221 = pneg %p124
        $region26: #{d_block_forward.1} parent=11 // pred_check_branch
          %223 = sbr.rel (%p221) target = $region28
        $region27: #{d_block_forward.1} parent=11 // pred_region
          _
        $region28: #{d_block_forward.1} parent=11 // pred_fallthru
          _
        // Predicated region
        $region29: #{d_block_forward.1} parent=11 // pred_check
          %p224 = pneg %p145
        $region30: #{d_block_forward.1} parent=11 // pred_check_branch
          %226 = sbr.rel (%p224) target = $region32
        $region31: #{d_block_forward.1} parent=11 // pred_region
          %s228 = ssub.s32 16, 16
          %229 = vsyncadd [#allocation4], %s228
          %s231 = sshll.u32 %s5, 4
          %s232 = int_to_ptr.vmem [resolvable:$true] %s231
          %234 = dma.vmem_to_smem %s232, 16, [#allocation3], [#allocation4]
        $region32: #{d_block_forward.1} parent=11 // pred_fallthru
          _
      $region12: #{d_block_forward.1} parent=5 // pred_fallthru
        _
      %p235 = scmp.lt.s32.totalorder %s14, 2
      // Predicated region
      $region33: #{d_block_forward.1} parent=5 // pred_check
        %p236 = pneg %p235
      $region34: #{d_block_forward.1} parent=5 // pred_check_branch
        %238 = sbr.rel (%p236) target = $region36
      $region35: #{d_block_forward.1} parent=5 // pred_region
        // Predicated region
        $region37: #{d_block_forward.1} parent=35 // pred_check
          %p239 = pneg %p34
        $region38: #{d_block_forward.1} parent=35 // pred_check_branch
          %241 = sbr.rel (%p239) target = $region40
        $region39: #{d_block_forward.1} parent=35 // pred_region
          %p242 = scmp.lt.s32.totalorder %s14, 1
          %s243 = scalar_select %p242, %s14, 1
          %s244 = smul.addr %s243, 2
          %s245 = smul.addr %s244, 8
          %s246 = scalar_lea.vmem %s0, %s245
        $region40: #{d_block_forward.1} parent=35 // pred_fallthru
          _
        // Predicated region
        $region41: #{d_block_forward.1} parent=35 // pred_check
          %p247 = pneg %p165
        $region42: #{d_block_forward.1} parent=35 // pred_check_branch
          %249 = sbr.rel (%p247) target = $region44
        $region43: #{d_block_forward.1} parent=35 // pred_region
          %p250 = scmp.lt.s32.totalorder %s14, 1
          %s251 = scalar_select %p250, %s14, 1
          %s252 = smul.addr %s251, 2
          %s253 = smul.addr %s252, 8
          %s254 = scalar_lea.vmem %s6, %s253
        $region44: #{d_block_forward.1} parent=35 // pred_fallthru
          _
      $region36: #{d_block_forward.1} parent=5 // pred_fallthru
        _
      %p255 = scmp.le.s32.totalorder 1, %s14
      %p256 = scmp.lt.s32.totalorder %s14, 3
      %p257 = pnand %p255, %p256
      %p258 = pneg %p257
      // Predicated region
      $region45: #{d_block_forward.1} parent=5 // pred_check
        _
      $region46: #{d_block_forward.1} parent=5 // pred_check_branch
        %260 = sbr.rel (%p257) target = $region48
      $region47: #{d_block_forward.1} parent=5 // pred_region
        %s261 = ssub.s32 %s14, 1
        // Predicated region
        $region49: #{d_block_forward.1} parent=47 // pred_check
          %p262 = pneg %p145
        $region50: #{d_block_forward.1} parent=47 // pred_check_branch
          %264 = sbr.rel (%p262) target = $region52
        $region51: #{d_block_forward.1} parent=47 // pred_region
          %265 = dma.done [#allocation4], 16
        $region52: #{d_block_forward.1} parent=47 // pred_fallthru
          _
        %266 = sfence
        %p267 = scmp.lt.s32.totalorder %s19, 1
        %s268 = scalar_select %p267, %s19, 1
        %s269 = smul.addr %s268, 2
        %s270 = smul.addr %s269, 8
        %s271 = scalar_lea.vmem %s0, %s270
        %p272 = pneg %p40
        %p273 = pneg %p37
        %p274 = pneg %p61
        %p275 = pneg %p58
        %p276 = pneg %p82
        %p277 = pneg %p79
        %p278 = pneg %p103
        %p279 = pneg %p100
        %p280 = pneg %p124
        %p281 = pneg %p121
        %p282 = pneg %p145
        %p283 = pneg %p142
        %p284 = scmp.lt.s32.totalorder %s19, 1
        %s285 = scalar_select %p284, %s19, 1
        %s286 = smul.addr %s285, 2
        %s287 = smul.addr %s286, 8
        %s288 = scalar_lea.vmem %s6, %s287
        %p289 = pneg %p171
        %p290 = pneg %p168
        %p291 = pneg %p197
        %p292 = pneg %p194
        %p293 = scmp.lt.s32.totalorder %s19, 1
        %s294 = scalar_select %p293, %s19, 1
        %s295 = smul.addr %s294, 2
        %s296 = smul.addr %s295, 8
        %s297 = scalar_lea.vmem %s7, %s296
        %p298 = scmp.lt.s32.totalorder %s19, 1
        %s299 = scalar_select %p298, %s19, 1
        %s300 = smul.addr %s299, 2
        %s301 = smul.addr %s300, 8
        %s302 = scalar_lea.vmem %s0, %s301
        %p303 = scmp.lt.s32.totalorder %s19, 1
        %s304 = scalar_select %p303, %s19, 1
        %s305 = smul.addr %s304, 2
        %s306 = smul.addr %s305, 8
        %s307 = scalar_lea.vmem %s6, %s306
        %p308 = scmp.lt.s32.totalorder %s19, 1
        %s309 = scalar_select %p308, %s19, 1
        %s310 = smul.addr %s309, 2
        %s311 = smul.addr %s310, 8
        %s312 = scalar_lea.vmem %s7, %s311
        %v313 = vld [vmem:[%s302] sm:$0xff]
        %v314 = vld [vmem:[%s302 + $0x8] sm:$0xff]
        %s315 = scalar_lea.vmem %s1, 64
        %v316 = vld [vmem:[%s315] sm:$0xff]
        %v317 = vld [vmem:[%s315 + $0x8] sm:$0xff]
        %v318 = vld [vmem:[%s315 + $0x10] sm:$0xff]
        %v319 = vld [vmem:[%s315 + $0x18] sm:$0xff]
        %v320 = vld [vmem:[%s315 + $0x20] sm:$0xff]
        %v321 = vld [vmem:[%s315 + $0x28] sm:$0xff]
        %v322 = vld [vmem:[%s315 + $0x30] sm:$0xff]
        %v323 = vld [vmem:[%s315 + $0x38] sm:$0xff]
        %vm324 = vcmask 523264
        %v326 = vsel %vm324, %v313, 0
        %v329 = vsel %vm324, %v314, 0
        %331 = vmatprep.subr.mxu0 0.0
        %332 = vmatpush1.msra.mxu0 0.0
        %333 = vmatprep.subr.mxu0 0.0
        %334 = vmatpush1.msra.mxu0 0.0
        %335 = vmatprep.subr.mxu0 0.0
        %336 = vmatpush1.msra.mxu0 0.0
        %337 = vmatprep.subr.mxu0 0.0
        %338 = vmatpush1.msra.mxu0 0.0
        %339 = vmatprep.subr.mxu0 0.0
        %340 = vmatpush1.msra.mxu0 0.0
        %341 = vmatprep.subr.mxu0 0.0
        %342 = vmatpush1.msra.mxu0 0.0
        %343 = vmatprep.subr.mxu0 0.0
        %344 = vmatpush1.msra.mxu0 0.0
        %345 = vmatprep.subr.mxu0 0.0
        %346 = vmatpush1.msra.mxu0 0.0
        %347 = vmatprep.subr.mxu0 0.0
        %348 = vmatpush1.msra.mxu0 %v323
        %349 = vmatprep.subr.mxu0 0.0
        %350 = vmatpush1.msra.mxu0 %v322
        %351 = vmatprep.subr.mxu0 0.0
        %352 = vmatpush1.msra.mxu0 %v321
        %353 = vmatprep.subr.mxu0 0.0
        %354 = vmatpush1.msra.mxu0 %v320
        %355 = vmatprep.subr.mxu0 0.0
        %356 = vmatpush1.msra.mxu0 %v319
        %357 = vmatprep.subr.mxu0 0.0
        %358 = vmatpush1.msra.mxu0 %v318
        %359 = vmatprep.subr.mxu0 0.0
        %360 = vmatpush1.msra.mxu0 %v317
        %361 = vmatprep.subr.mxu0 0.0
        %362 = vmatpush1.msra.mxu0 %v316
        %363 = vmatprep.subr.mxu0 0.0
        %364 = vmatpush2.msra.mxu0 0.0
        %365 = vmatprep.subr.mxu0 0.0
        %366 = vmatpush2.msra.mxu0 0.0
        %367 = vmatprep.subr.mxu0 0.0
        %368 = vmatpush2.msra.mxu0 0.0
        %369 = vmatprep.subr.mxu0 0.0
        %370 = vmatpush2.msra.mxu0 0.0
        %371 = vmatprep.subr.mxu0 0.0
        %372 = vmatpush2.msra.mxu0 0.0
        %373 = vmatprep.subr.mxu0 0.0
        %374 = vmatpush2.msra.mxu0 0.0
        %375 = vmatprep.subr.mxu0 0.0
        %376 = vmatpush2.msra.mxu0 0.0
        %377 = vmatprep.subr.mxu0 0.0
        %378 = vmatpush2.msra.mxu0 0.0
        %379 = vmatprep.subr.mxu0 0.0
        %380 = vmatpush2.msra.mxu0 0.0
        %381 = vmatprep.subr.mxu0 0.0
        %382 = vmatpush2.msra.mxu0 0.0
        %383 = vmatprep.subr.mxu0 0.0
        %384 = vmatpush2.msra.mxu0 0.0
        %385 = vmatprep.subr.mxu0 0.0
        %386 = vmatpush2.msra.mxu0 0.0
        %387 = vmatprep.subr.mxu0 0.0
        %388 = vmatpush2.msra.mxu0 0.0
        %389 = vmatprep.subr.mxu0 0.0
        %390 = vmatpush2.msra.mxu0 0.0
        %391 = vmatprep.subr.mxu0 0.0
        %392 = vmatpush2.msra.mxu0 0.0
        %393 = vmatprep.subr.mxu0 0.0
        %394 = vmatpush2.msra.mxu0 0.0
        %395 = vmatprep.mubr.f32.mxu0 0.0
        %396 = vmatmul.mubr.f32.gmra.mxu0 %v326
        %v397 = vpop.f32.mrf.mxu0
        %v398 = vadd.f32 0.0, %v397
        %v399 = vpop.f32.mrf.mxu0
        %400 = vmatprep.mubr.f32.mxu0 0.0
        %401 = vmatmul.mubr.f32.gmra.mxu0 %v329
        %v402 = vpop.f32.mrf.mxu0
        %v403 = vadd.f32 0.0, %v402
        %v404 = vpop.f32.mrf.mxu0
        %405 = vdwg.mxu0
        %406 = vst [vmem:[#allocation2] sm:$0xff] %v398
        %407 = vst [vmem:[#allocation2 + $0x8] sm:$0xff] %v403
        %v408 = vld [vmem:[#allocation2 + $0x1] sm:$0xff]
        %v409 = vld [vmem:[#allocation2 + $0x9] sm:$0x7f]
        %v410 = vld [vmem:[%s1] sm:$0xff]
        %v411 = vld [vmem:[%s1 + $0x8] sm:$0xff]
        %v412 = vld [vmem:[%s1 + $0x10] sm:$0xff]
        %v413 = vld [vmem:[%s1 + $0x18] sm:$0xff]
        %v414 = vld [vmem:[%s1 + $0x20] sm:$0xff]
        %v415 = vld [vmem:[%s1 + $0x28] sm:$0xff]
        %v416 = vld [vmem:[%s1 + $0x30] sm:$0xff]
        %v417 = vld [vmem:[%s1 + $0x38] sm:$0xff]
        %418 = vmatprep.subr.mxu0 0.0
        %419 = vmatpush1.msra.mxu0 0.0
        %420 = vmatprep.subr.mxu0 0.0
        %421 = vmatpush1.msra.mxu0 0.0
        %422 = vmatprep.subr.mxu0 0.0
        %423 = vmatpush1.msra.mxu0 0.0
        %424 = vmatprep.subr.mxu0 0.0
        %425 = vmatpush1.msra.mxu0 0.0
        %426 = vmatprep.subr.mxu0 0.0
        %427 = vmatpush1.msra.mxu0 0.0
        %428 = vmatprep.subr.mxu0 0.0
        %429 = vmatpush1.msra.mxu0 0.0
        %430 = vmatprep.subr.mxu0 0.0
        %431 = vmatpush1.msra.mxu0 0.0
        %432 = vmatprep.subr.mxu0 0.0
        %433 = vmatpush1.msra.mxu0 0.0
        %434 = vmatprep.subr.mxu0 0.0
        %435 = vmatpush1.msra.mxu0 %v417
        %436 = vmatprep.subr.mxu0 0.0
        %437 = vmatpush1.msra.mxu0 %v416
        %438 = vmatprep.subr.mxu0 0.0
        %439 = vmatpush1.msra.mxu0 %v415
        %440 = vmatprep.subr.mxu0 0.0
        %441 = vmatpush1.msra.mxu0 %v414
        %442 = vmatprep.subr.mxu0 0.0
        %443 = vmatpush1.msra.mxu0 %v413
        %444 = vmatprep.subr.mxu0 0.0
        %445 = vmatpush1.msra.mxu0 %v412
        %446 = vmatprep.subr.mxu0 0.0
        %447 = vmatpush1.msra.mxu0 %v411
        %448 = vmatprep.subr.mxu0 0.0
        %449 = vmatpush1.msra.mxu0 %v410
        %450 = vmatprep.subr.mxu0 0.0
        %451 = vmatpush2.msra.mxu0 0.0
        %452 = vmatprep.subr.mxu0 0.0
        %453 = vmatpush2.msra.mxu0 0.0
        %454 = vmatprep.subr.mxu0 0.0
        %455 = vmatpush2.msra.mxu0 0.0
        %456 = vmatprep.subr.mxu0 0.0
        %457 = vmatpush2.msra.mxu0 0.0
        %458 = vmatprep.subr.mxu0 0.0
        %459 = vmatpush2.msra.mxu0 0.0
        %460 = vmatprep.subr.mxu0 0.0
        %461 = vmatpush2.msra.mxu0 0.0
        %462 = vmatprep.subr.mxu0 0.0
        %463 = vmatpush2.msra.mxu0 0.0
        %464 = vmatprep.subr.mxu0 0.0
        %465 = vmatpush2.msra.mxu0 0.0
        %466 = vmatprep.subr.mxu0 0.0
        %467 = vmatpush2.msra.mxu0 0.0
        %468 = vmatprep.subr.mxu0 0.0
        %469 = vmatpush2.msra.mxu0 0.0
        %470 = vmatprep.subr.mxu0 0.0
        %471 = vmatpush2.msra.mxu0 0.0
        %472 = vmatprep.subr.mxu0 0.0
        %473 = vmatpush2.msra.mxu0 0.0
        %474 = vmatprep.subr.mxu0 0.0
        %475 = vmatpush2.msra.mxu0 0.0
        %476 = vmatprep.subr.mxu0 0.0
        %477 = vmatpush2.msra.mxu0 0.0
        %478 = vmatprep.subr.mxu0 0.0
        %479 = vmatpush2.msra.mxu0 0.0
        %480 = vmatprep.subr.mxu0 0.0
        %481 = vmatpush2.msra.mxu0 0.0
        %482 = vmatprep.mubr.f32.mxu0 0.0
        %483 = vmatmul.mubr.f32.gmra.mxu0 %v326
        %v484 = vpop.f32.mrf.mxu0
        %v485 = vadd.f32 0.0, %v484
        %v486 = vpop.f32.mrf.mxu0
        %487 = vmatprep.mubr.f32.mxu0 0.0
        %488 = vmatmul.mubr.f32.gmra.mxu0 %v329
        %v489 = vpop.f32.mrf.mxu0
        %v490 = vadd.f32 0.0, %v489
        %v491 = vpop.f32.mrf.mxu0
        %492 = vdwg.mxu0
        %v493 = vadd.f32 %v408, %v485
        %v494 = vadd.f32 %v409, %v490
        %495 = vst [vmem:[#allocation2 + $0x1] sm:$0xff] %v493
        %496 = vst [vmem:[#allocation2 + $0x9] sm:$0x7f] %v494
        %v497 = vld [vmem:[#allocation2] sm:$0xff]
        %v498 = vld [vmem:[#allocation2 + $0x8] sm:$0x7f]
        %s499 = scalar_lea.vmem %s1, 128
        %v500 = vld [vmem:[%s499] sm:$0xff]
        %v501 = vld [vmem:[%s499 + $0x8] sm:$0xff]
        %v502 = vld [vmem:[%s499 + $0x10] sm:$0xff]
        %v503 = vld [vmem:[%s499 + $0x18] sm:$0xff]
        %v504 = vld [vmem:[%s499 + $0x20] sm:$0xff]
        %v505 = vld [vmem:[%s499 + $0x28] sm:$0xff]
        %v506 = vld [vmem:[%s499 + $0x30] sm:$0xff]
        %v507 = vld [vmem:[%s499 + $0x38] sm:$0xff]
        %vm508 = vcmask 1046528
        %v509 = vrot.slane %v313, 1
        %v510 = vrot.slane %v314, 1
        %v511 = vsel %vm508, %v509, %v510
        %v512 = vsel %vm324, %v511, 0
        %v514 = vsel %vm324, %v510, 0
        %516 = vmatprep.subr.mxu0 0.0
        %517 = vmatpush1.msra.mxu0 0.0
        %518 = vmatprep.subr.mxu0 0.0
        %519 = vmatpush1.msra.mxu0 0.0
        %520 = vmatprep.subr.mxu0 0.0
        %521 = vmatpush1.msra.mxu0 0.0
        %522 = vmatprep.subr.mxu0 0.0
        %523 = vmatpush1.msra.mxu0 0.0
        %524 = vmatprep.subr.mxu0 0.0
        %525 = vmatpush1.msra.mxu0 0.0
        %526 = vmatprep.subr.mxu0 0.0
        %527 = vmatpush1.msra.mxu0 0.0
        %528 = vmatprep.subr.mxu0 0.0
        %529 = vmatpush1.msra.mxu0 0.0
        %530 = vmatprep.subr.mxu0 0.0
        %531 = vmatpush1.msra.mxu0 0.0
        %532 = vmatprep.subr.mxu0 0.0
        %533 = vmatpush1.msra.mxu0 %v507
        %534 = vmatprep.subr.mxu0 0.0
        %535 = vmatpush1.msra.mxu0 %v506
        %536 = vmatprep.subr.mxu0 0.0
        %537 = vmatpush1.msra.mxu0 %v505
        %538 = vmatprep.subr.mxu0 0.0
        %539 = vmatpush1.msra.mxu0 %v504
        %540 = vmatprep.subr.mxu0 0.0
        %541 = vmatpush1.msra.mxu0 %v503
        %542 = vmatprep.subr.mxu0 0.0
        %543 = vmatpush1.msra.mxu0 %v502
        %544 = vmatprep.subr.mxu0 0.0
        %545 = vmatpush1.msra.mxu0 %v501
        %546 = vmatprep.subr.mxu0 0.0
        %547 = vmatpush1.msra.mxu0 %v500
        %548 = vmatprep.subr.mxu0 0.0
        %549 = vmatpush2.msra.mxu0 0.0
        %550 = vmatprep.subr.mxu0 0.0
        %551 = vmatpush2.msra.mxu0 0.0
        %552 = vmatprep.subr.mxu0 0.0
        %553 = vmatpush2.msra.mxu0 0.0
        %554 = vmatprep.subr.mxu0 0.0
        %555 = vmatpush2.msra.mxu0 0.0
        %556 = vmatprep.subr.mxu0 0.0
        %557 = vmatpush2.msra.mxu0 0.0
        %558 = vmatprep.subr.mxu0 0.0
        %559 = vmatpush2.msra.mxu0 0.0
        %560 = vmatprep.subr.mxu0 0.0
        %561 = vmatpush2.msra.mxu0 0.0
        %562 = vmatprep.subr.mxu0 0.0
        %563 = vmatpush2.msra.mxu0 0.0
        %564 = vmatprep.subr.mxu0 0.0
        %565 = vmatpush2.msra.mxu0 0.0
        %566 = vmatprep.subr.mxu0 0.0
        %567 = vmatpush2.msra.mxu0 0.0
        %568 = vmatprep.subr.mxu0 0.0
        %569 = vmatpush2.msra.mxu0 0.0
        %570 = vmatprep.subr.mxu0 0.0
        %571 = vmatpush2.msra.mxu0 0.0
        %572 = vmatprep.subr.mxu0 0.0
        %573 = vmatpush2.msra.mxu0 0.0
        %574 = vmatprep.subr.mxu0 0.0
        %575 = vmatpush2.msra.mxu0 0.0
        %576 = vmatprep.subr.mxu0 0.0
        %577 = vmatpush2.msra.mxu0 0.0
        %578 = vmatprep.subr.mxu0 0.0
        %579 = vmatpush2.msra.mxu0 0.0
        %580 = vmatprep.mubr.f32.mxu0 0.0
        %581 = vmatmul.mubr.f32.gmra.mxu0 %v512
        %v582 = vpop.f32.mrf.mxu0
        %v583 = vadd.f32 0.0, %v582
        %v584 = vpop.f32.mrf.mxu0
        %585 = vmatprep.mubr.f32.mxu0 0.0
        %586 = vmatmul.mubr.f32.gmra.mxu0 %v514
        %v587 = vpop.f32.mrf.mxu0
        %v588 = vadd.f32 0.0, %v587
        %v589 = vpop.f32.mrf.mxu0
        %590 = vdwg.mxu0
        %v591 = vadd.f32 %v497, %v583
        %v592 = vadd.f32 %v498, %v588
        %593 = vst [vmem:[#allocation2] sm:$0xff] %v591
        %594 = vst [vmem:[#allocation2 + $0x8] sm:$0x7f] %v592
        %v595 = vld [vmem:[#allocation2] sm:$0xff]
        %v596 = vld [vmem:[#allocation2 + $0x8] sm:$0xff]
        %vm597 = vcmp.gt.f32.partialorder %v595, 0.0
        %vm598 = vcmp.gt.f32.partialorder %v596, 0.0
        %v599 = vmul.f32 %v595, 0.2
        %v600 = vmul.f32 %v596, 0.2
        %v601 = vsel %vm597, %v595, %v599
        %v602 = vsel %vm598, %v596, %v600
        %s603 = scalar_lea.vmem %s2, 128
        %v604 = vld [vmem:[%s603] sm:$0xff]
        %v605 = vld [vmem:[%s603 + $0x8] sm:$0xff]
        %v606 = vld [vmem:[%s603 + $0x10] sm:$0xff]
        %v607 = vld [vmem:[%s603 + $0x18] sm:$0xff]
        %v608 = vld [vmem:[%s603 + $0x20] sm:$0xff]
        %v609 = vld [vmem:[%s603 + $0x28] sm:$0xff]
        %v610 = vld [vmem:[%s603 + $0x30] sm:$0xff]
        %v611 = vld [vmem:[%s603 + $0x38] sm:$0xff]
        %v612 = vld [vmem:[%s603 + $0x40] sm:$0xff]
        %v613 = vld [vmem:[%s603 + $0x48] sm:$0xff]
        %v614 = vld [vmem:[%s603 + $0x50] sm:$0xff]
        %v615 = vld [vmem:[%s603 + $0x58] sm:$0xff]
        %v616 = vld [vmem:[%s603 + $0x60] sm:$0xff]
        %v617 = vld [vmem:[%s603 + $0x68] sm:$0xff]
        %v618 = vld [vmem:[%s603 + $0x70] sm:$0xff]
        %v619 = vld [vmem:[%s603 + $0x78] sm:$0xff]
        %620 = vmatprep.subr.mxu0 0.0
        %621 = vmatpush1.msra.mxu0 %v619
        %622 = vmatprep.subr.mxu0 0.0
        %623 = vmatpush1.msra.mxu0 %v618
        %624 = vmatprep.subr.mxu0 0.0
        %625 = vmatpush1.msra.mxu0 %v617
        %626 = vmatprep.subr.mxu0 0.0
        %627 = vmatpush1.msra.mxu0 %v616
        %628 = vmatprep.subr.mxu0 0.0
        %629 = vmatpush1.msra.mxu0 %v615
        %630 = vmatprep.subr.mxu0 0.0
        %631 = vmatpush1.msra.mxu0 %v614
        %632 = vmatprep.subr.mxu0 0.0
        %633 = vmatpush1.msra.mxu0 %v613
        %634 = vmatprep.subr.mxu0 0.0
        %635 = vmatpush1.msra.mxu0 %v612
        %636 = vmatprep.subr.mxu0 0.0
        %637 = vmatpush1.msra.mxu0 %v611
        %638 = vmatprep.subr.mxu0 0.0
        %639 = vmatpush1.msra.mxu0 %v610
        %640 = vmatprep.subr.mxu0 0.0
        %641 = vmatpush1.msra.mxu0 %v609
        %642 = vmatprep.subr.mxu0 0.0
        %643 = vmatpush1.msra.mxu0 %v608
        %644 = vmatprep.subr.mxu0 0.0
        %645 = vmatpush1.msra.mxu0 %v607
        %646 = vmatprep.subr.mxu0 0.0
        %647 = vmatpush1.msra.mxu0 %v606
        %648 = vmatprep.subr.mxu0 0.0
        %649 = vmatpush1.msra.mxu0 %v605
        %650 = vmatprep.subr.mxu0 0.0
        %651 = vmatpush1.msra.mxu0 %v604
        %652 = vmatprep.subr.mxu0 0.0
        %653 = vmatpush2.msra.mxu0 0.0
        %654 = vmatprep.subr.mxu0 0.0
        %655 = vmatpush2.msra.mxu0 0.0
        %656 = vmatprep.subr.mxu0 0.0
        %657 = vmatpush2.msra.mxu0 0.0
        %658 = vmatprep.subr.mxu0 0.0
        %659 = vmatpush2.msra.mxu0 0.0
        %660 = vmatprep.subr.mxu0 0.0
        %661 = vmatpush2.msra.mxu0 0.0
        %662 = vmatprep.subr.mxu0 0.0
        %663 = vmatpush2.msra.mxu0 0.0
        %664 = vmatprep.subr.mxu0 0.0
        %665 = vmatpush2.msra.mxu0 0.0
        %666 = vmatprep.subr.mxu0 0.0
        %667 = vmatpush2.msra.mxu0 0.0
        %668 = vmatprep.subr.mxu0 0.0
        %669 = vmatpush2.msra.mxu0 0.0
        %670 = vmatprep.subr.mxu0 0.0
        %671 = vmatpush2.msra.mxu0 0.0
        %672 = vmatprep.subr.mxu0 0.0
        %673 = vmatpush2.msra.mxu0 0.0
        %674 = vmatprep.subr.mxu0 0.0
        %675 = vmatpush2.msra.mxu0 0.0
        %676 = vmatprep.subr.mxu0 0.0
        %677 = vmatpush2.msra.mxu0 0.0
        %678 = vmatprep.subr.mxu0 0.0
        %679 = vmatpush2.msra.mxu0 0.0
        %680 = vmatprep.subr.mxu0 0.0
        %681 = vmatpush2.msra.mxu0 0.0
        %682 = vmatprep.subr.mxu0 0.0
        %683 = vmatpush2.msra.mxu0 0.0
        %684 = vmatprep.mubr.f32.mxu0 0.0
        %685 = vmatmul.mubr.f32.gmra.mxu0 %v601
        %v686 = vpop.f32.mrf.mxu0
        %v687 = vadd.f32 0.0, %v686
        %v688 = vpop.f32.mrf.mxu0
        %689 = vmatprep.mubr.f32.mxu0 0.0
        %690 = vmatmul.mubr.f32.gmra.mxu0 %v602
        %v691 = vpop.f32.mrf.mxu0
        %v692 = vadd.f32 0.0, %v691
        %v693 = vpop.f32.mrf.mxu0
        %694 = vdwg.mxu0
        %695 = vst [vmem:[#allocation2] sm:$0xff] %v687
        %696 = vst [vmem:[#allocation2 + $0x8] sm:$0xff] %v692
        %v697 = vld [vmem:[#allocation2 + $0x1] sm:$0xff]
        %v698 = vld [vmem:[#allocation2 + $0x9] sm:$0x7f]
        %v699 = vld [vmem:[%s2] sm:$0xff]
        %v700 = vld [vmem:[%s2 + $0x8] sm:$0xff]
        %v701 = vld [vmem:[%s2 + $0x10] sm:$0xff]
        %v702 = vld [vmem:[%s2 + $0x18] sm:$0xff]
        %v703 = vld [vmem:[%s2 + $0x20] sm:$0xff]
        %v704 = vld [vmem:[%s2 + $0x28] sm:$0xff]
        %v705 = vld [vmem:[%s2 + $0x30] sm:$0xff]
        %v706 = vld [vmem:[%s2 + $0x38] sm:$0xff]
        %v707 = vld [vmem:[%s2 + $0x40] sm:$0xff]
        %v708 = vld [vmem:[%s2 + $0x48] sm:$0xff]
        %v709 = vld [vmem:[%s2 + $0x50] sm:$0xff]
        %v710 = vld [vmem:[%s2 + $0x58] sm:$0xff]
        %v711 = vld [vmem:[%s2 + $0x60] sm:$0xff]
        %v712 = vld [vmem:[%s2 + $0x68] sm:$0xff]
        %v713 = vld [vmem:[%s2 + $0x70] sm:$0xff]
        %v714 = vld [vmem:[%s2 + $0x78] sm:$0xff]
        %715 = vmatprep.subr.mxu0 0.0
        %716 = vmatpush1.msra.mxu0 %v714
        %717 = vmatprep.subr.mxu0 0.0
        %718 = vmatpush1.msra.mxu0 %v713
        %719 = vmatprep.subr.mxu0 0.0
        %720 = vmatpush1.msra.mxu0 %v712
        %721 = vmatprep.subr.mxu0 0.0
        %722 = vmatpush1.msra.mxu0 %v711
        %723 = vmatprep.subr.mxu0 0.0
        %724 = vmatpush1.msra.mxu0 %v710
        %725 = vmatprep.subr.mxu0 0.0
        %726 = vmatpush1.msra.mxu0 %v709
        %727 = vmatprep.subr.mxu0 0.0
        %728 = vmatpush1.msra.mxu0 %v708
        %729 = vmatprep.subr.mxu0 0.0
        %730 = vmatpush1.msra.mxu0 %v707
        %731 = vmatprep.subr.mxu0 0.0
        %732 = vmatpush1.msra.mxu0 %v706
        %733 = vmatprep.subr.mxu0 0.0
        %734 = vmatpush1.msra.mxu0 %v705
        %735 = vmatprep.subr.mxu0 0.0
        %736 = vmatpush1.msra.mxu0 %v704
        %737 = vmatprep.subr.mxu0 0.0
        %738 = vmatpush1.msra.mxu0 %v703
        %739 = vmatprep.subr.mxu0 0.0
        %740 = vmatpush1.msra.mxu0 %v702
        %741 = vmatprep.subr.mxu0 0.0
        %742 = vmatpush1.msra.mxu0 %v701
        %743 = vmatprep.subr.mxu0 0.0
        %744 = vmatpush1.msra.mxu0 %v700
        %745 = vmatprep.subr.mxu0 0.0
        %746 = vmatpush1.msra.mxu0 %v699
        %747 = vmatprep.subr.mxu0 0.0
        %748 = vmatpush2.msra.mxu0 0.0
        %749 = vmatprep.subr.mxu0 0.0
        %750 = vmatpush2.msra.mxu0 0.0
        %751 = vmatprep.subr.mxu0 0.0
        %752 = vmatpush2.msra.mxu0 0.0
        %753 = vmatprep.subr.mxu0 0.0
        %754 = vmatpush2.msra.mxu0 0.0
        %755 = vmatprep.subr.mxu0 0.0
        %756 = vmatpush2.msra.mxu0 0.0
        %757 = vmatprep.subr.mxu0 0.0
        %758 = vmatpush2.msra.mxu0 0.0
        %759 = vmatprep.subr.mxu0 0.0
        %760 = vmatpush2.msra.mxu0 0.0
        %761 = vmatprep.subr.mxu0 0.0
        %762 = vmatpush2.msra.mxu0 0.0
        %763 = vmatprep.subr.mxu0 0.0
        %764 = vmatpush2.msra.mxu0 0.0
        %765 = vmatprep.subr.mxu0 0.0
        %766 = vmatpush2.msra.mxu0 0.0
        %767 = vmatprep.subr.mxu0 0.0
        %768 = vmatpush2.msra.mxu0 0.0
        %769 = vmatprep.subr.mxu0 0.0
        %770 = vmatpush2.msra.mxu0 0.0
        %771 = vmatprep.subr.mxu0 0.0
        %772 = vmatpush2.msra.mxu0 0.0
        %773 = vmatprep.subr.mxu0 0.0
        %774 = vmatpush2.msra.mxu0 0.0
        %775 = vmatprep.subr.mxu0 0.0
        %776 = vmatpush2.msra.mxu0 0.0
        %777 = vmatprep.subr.mxu0 0.0
        %778 = vmatpush2.msra.mxu0 0.0
        %779 = vmatprep.mubr.f32.mxu0 0.0
        %780 = vmatmul.mubr.f32.gmra.mxu0 %v601
        %v781 = vpop.f32.mrf.mxu0
        %v782 = vadd.f32 0.0, %v781
        %v783 = vpop.f32.mrf.mxu0
        %784 = vmatprep.mubr.f32.mxu0 0.0
        %785 = vmatmul.mubr.f32.gmra.mxu0 %v602
        %v786 = vpop.f32.mrf.mxu0
        %v787 = vadd.f32 0.0, %v786
        %v788 = vpop.f32.mrf.mxu0
        %789 = vdwg.mxu0
        %v790 = vadd.f32 %v697, %v782
        %v791 = vadd.f32 %v698, %v787
        %792 = vst [vmem:[#allocation2 + $0x1] sm:$0xff] %v790
        %793 = vst [vmem:[#allocation2 + $0x9] sm:$0x7f] %v791
        %v794 = vld [vmem:[#allocation2] sm:$0xff]
        %v795 = vld [vmem:[#allocation2 + $0x8] sm:$0x7f]
        %s796 = scalar_lea.vmem %s2, 256
        %v797 = vld [vmem:[%s796] sm:$0xff]
        %v798 = vld [vmem:[%s796 + $0x8] sm:$0xff]
        %v799 = vld [vmem:[%s796 + $0x10] sm:$0xff]
        %v800 = vld [vmem:[%s796 + $0x18] sm:$0xff]
        %v801 = vld [vmem:[%s796 + $0x20] sm:$0xff]
        %v802 = vld [vmem:[%s796 + $0x28] sm:$0xff]
        %v803 = vld [vmem:[%s796 + $0x30] sm:$0xff]
        %v804 = vld [vmem:[%s796 + $0x38] sm:$0xff]
        %v805 = vld [vmem:[%s796 + $0x40] sm:$0xff]
        %v806 = vld [vmem:[%s796 + $0x48] sm:$0xff]
        %v807 = vld [vmem:[%s796 + $0x50] sm:$0xff]
        %v808 = vld [vmem:[%s796 + $0x58] sm:$0xff]
        %v809 = vld [vmem:[%s796 + $0x60] sm:$0xff]
        %v810 = vld [vmem:[%s796 + $0x68] sm:$0xff]
        %v811 = vld [vmem:[%s796 + $0x70] sm:$0xff]
        %v812 = vld [vmem:[%s796 + $0x78] sm:$0xff]
        %v815 = vrot.slane %v601, 1
        %v816 = vrot.slane %v602, 1
        %v817 = vsel %vm508, %v815, %v816
        %820 = vmatprep.subr.mxu0 0.0
        %821 = vmatpush1.msra.mxu0 %v812
        %822 = vmatprep.subr.mxu0 0.0
        %823 = vmatpush1.msra.mxu0 %v811
        %824 = vmatprep.subr.mxu0 0.0
        %825 = vmatpush1.msra.mxu0 %v810
        %826 = vmatprep.subr.mxu0 0.0
        %827 = vmatpush1.msra.mxu0 %v809
        %828 = vmatprep.subr.mxu0 0.0
        %829 = vmatpush1.msra.mxu0 %v808
        %830 = vmatprep.subr.mxu0 0.0
        %831 = vmatpush1.msra.mxu0 %v807
        %832 = vmatprep.subr.mxu0 0.0
        %833 = vmatpush1.msra.mxu0 %v806
        %834 = vmatprep.subr.mxu0 0.0
        %835 = vmatpush1.msra.mxu0 %v805
        %836 = vmatprep.subr.mxu0 0.0
        %837 = vmatpush1.msra.mxu0 %v804
        %838 = vmatprep.subr.mxu0 0.0
        %839 = vmatpush1.msra.mxu0 %v803
        %840 = vmatprep.subr.mxu0 0.0
        %841 = vmatpush1.msra.mxu0 %v802
        %842 = vmatprep.subr.mxu0 0.0
        %843 = vmatpush1.msra.mxu0 %v801
        %844 = vmatprep.subr.mxu0 0.0
        %845 = vmatpush1.msra.mxu0 %v800
        %846 = vmatprep.subr.mxu0 0.0
        %847 = vmatpush1.msra.mxu0 %v799
        %848 = vmatprep.subr.mxu0 0.0
        %849 = vmatpush1.msra.mxu0 %v798
        %850 = vmatprep.subr.mxu0 0.0
        %851 = vmatpush1.msra.mxu0 %v797
        %852 = vmatprep.subr.mxu0 0.0
        %853 = vmatpush2.msra.mxu0 0.0
        %854 = vmatprep.subr.mxu0 0.0
        %855 = vmatpush2.msra.mxu0 0.0
        %856 = vmatprep.subr.mxu0 0.0
        %857 = vmatpush2.msra.mxu0 0.0
        %858 = vmatprep.subr.mxu0 0.0
        %859 = vmatpush2.msra.mxu0 0.0
        %860 = vmatprep.subr.mxu0 0.0
        %861 = vmatpush2.msra.mxu0 0.0
        %862 = vmatprep.subr.mxu0 0.0
        %863 = vmatpush2.msra.mxu0 0.0
        %864 = vmatprep.subr.mxu0 0.0
        %865 = vmatpush2.msra.mxu0 0.0
        %866 = vmatprep.subr.mxu0 0.0
        %867 = vmatpush2.msra.mxu0 0.0
        %868 = vmatprep.subr.mxu0 0.0
        %869 = vmatpush2.msra.mxu0 0.0
        %870 = vmatprep.subr.mxu0 0.0
        %871 = vmatpush2.msra.mxu0 0.0
        %872 = vmatprep.subr.mxu0 0.0
        %873 = vmatpush2.msra.mxu0 0.0
        %874 = vmatprep.subr.mxu0 0.0
        %875 = vmatpush2.msra.mxu0 0.0
        %876 = vmatprep.subr.mxu0 0.0
        %877 = vmatpush2.msra.mxu0 0.0
        %878 = vmatprep.subr.mxu0 0.0
        %879 = vmatpush2.msra.mxu0 0.0
        %880 = vmatprep.subr.mxu0 0.0
        %881 = vmatpush2.msra.mxu0 0.0
        %882 = vmatprep.subr.mxu0 0.0
        %883 = vmatpush2.msra.mxu0 0.0
        %884 = vmatprep.mubr.f32.mxu0 0.0
        %885 = vmatmul.mubr.f32.gmra.mxu0 %v817
        %v886 = vpop.f32.mrf.mxu0
        %v887 = vadd.f32 0.0, %v886
        %v888 = vpop.f32.mrf.mxu0
        %889 = vmatprep.mubr.f32.mxu0 0.0
        %890 = vmatmul.mubr.f32.gmra.mxu0 %v816
        %v891 = vpop.f32.mrf.mxu0
        %v892 = vadd.f32 0.0, %v891
        %v893 = vpop.f32.mrf.mxu0
        %894 = vdwg.mxu0
        %v895 = vadd.f32 %v794, %v887
        %v896 = vadd.f32 %v795, %v892
        %897 = vst [vmem:[#allocation2] sm:$0xff] %v895
        %898 = vst [vmem:[#allocation2 + $0x8] sm:$0x7f] %v896
        %v899 = vld [vmem:[#allocation2] sm:$0xff]
        %v900 = vld [vmem:[#allocation2 + $0x8] sm:$0xff]
        %vm901 = vcmp.gt.f32.partialorder %v899, 0.0
        %vm902 = vcmp.gt.f32.partialorder %v900, 0.0
        %v903 = vmul.f32 %v899, 0.2
        %v904 = vmul.f32 %v900, 0.2
        %v905 = vsel %vm901, %v899, %v903
        %v906 = vsel %vm902, %v900, %v904
        %v907 = vld [vmem:[%s3] sm:$0xff]
        %v908 = vld [vmem:[%s3 + $0x8] sm:$0xff]
        %v909 = vld [vmem:[%s3 + $0x10] sm:$0xff]
        %v910 = vld [vmem:[%s3 + $0x18] sm:$0xff]
        %v911 = vld [vmem:[%s3 + $0x20] sm:$0xff]
        %v912 = vld [vmem:[%s3 + $0x28] sm:$0xff]
        %v913 = vld [vmem:[%s3 + $0x30] sm:$0xff]
        %v914 = vld [vmem:[%s3 + $0x38] sm:$0xff]
        %v915 = vld [vmem:[%s4] sm:$0x1]
        %v917 = vlaneseq
        %v918 = vshrl.u32 %v917, 7
        %v919 = vsub.s32 0, %v918
        %v920 = vrot.slane %v915, %v919
        %922 = vmatprep.subr.mxu0 0.0
        %923 = vmatpush1.msra.mxu0 0.0
        %924 = vmatprep.subr.mxu0 0.0
        %925 = vmatpush1.msra.mxu0 0.0
        %926 = vmatprep.subr.mxu0 0.0
        %927 = vmatpush1.msra.mxu0 0.0
        %928 = vmatprep.subr.mxu0 0.0
        %929 = vmatpush1.msra.mxu0 0.0
        %930 = vmatprep.subr.mxu0 0.0
        %931 = vmatpush1.msra.mxu0 0.0
        %932 = vmatprep.subr.mxu0 0.0
        %933 = vmatpush1.msra.mxu0 0.0
        %934 = vmatprep.subr.mxu0 0.0
        %935 = vmatpush1.msra.mxu0 0.0
        %936 = vmatprep.subr.mxu0 0.0
        %937 = vmatpush1.msra.mxu0 0.0
        %938 = vmatprep.subr.mxu0 0.0
        %939 = vmatpush1.msra.mxu0 %v914
        %940 = vmatprep.subr.mxu0 0.0
        %941 = vmatpush1.msra.mxu0 %v913
        %942 = vmatprep.subr.mxu0 0.0
        %943 = vmatpush1.msra.mxu0 %v912
        %944 = vmatprep.subr.mxu0 0.0
        %945 = vmatpush1.msra.mxu0 %v911
        %946 = vmatprep.subr.mxu0 0.0
        %947 = vmatpush1.msra.mxu0 %v910
        %948 = vmatprep.subr.mxu0 0.0
        %949 = vmatpush1.msra.mxu0 %v909
        %950 = vmatprep.subr.mxu0 0.0
        %951 = vmatpush1.msra.mxu0 %v908
        %952 = vmatprep.subr.mxu0 0.0
        %953 = vmatpush1.msra.mxu0 %v907
        %954 = vmatprep.subr.mxu0 0.0
        %955 = vmatpush2.msra.mxu0 0.0
        %956 = vmatprep.subr.mxu0 0.0
        %957 = vmatpush2.msra.mxu0 0.0
        %958 = vmatprep.subr.mxu0 0.0
        %959 = vmatpush2.msra.mxu0 0.0
        %960 = vmatprep.subr.mxu0 0.0
        %961 = vmatpush2.msra.mxu0 0.0
        %962 = vmatprep.subr.mxu0 0.0
        %963 = vmatpush2.msra.mxu0 0.0
        %964 = vmatprep.subr.mxu0 0.0
        %965 = vmatpush2.msra.mxu0 0.0
        %966 = vmatprep.subr.mxu0 0.0
        %967 = vmatpush2.msra.mxu0 0.0
        %968 = vmatprep.subr.mxu0 0.0
        %969 = vmatpush2.msra.mxu0 0.0
        %970 = vmatprep.subr.mxu0 0.0
        %971 = vmatpush2.msra.mxu0 0.0
        %972 = vmatprep.subr.mxu0 0.0
        %973 = vmatpush2.msra.mxu0 0.0
        %974 = vmatprep.subr.mxu0 0.0
        %975 = vmatpush2.msra.mxu0 0.0
        %976 = vmatprep.subr.mxu0 0.0
        %977 = vmatpush2.msra.mxu0 0.0
        %978 = vmatprep.subr.mxu0 0.0
        %979 = vmatpush2.msra.mxu0 0.0
        %980 = vmatprep.subr.mxu0 0.0
        %981 = vmatpush2.msra.mxu0 0.0
        %982 = vmatprep.subr.mxu0 0.0
        %983 = vmatpush2.msra.mxu0 0.0
        %984 = vmatprep.subr.mxu0 0.0
        %985 = vmatpush2.msra.mxu0 0.0
        %986 = vmatprep.mubr.f32.mxu0 0.0
        %987 = vmatmul.mubr.f32.gmra.mxu0 %v326
        %v988 = vpop.f32.mrf.mxu0
        %v989 = vadd.f32 %v920, %v988
        %v990 = vpop.f32.mrf.mxu0
        %991 = vmatprep.mubr.f32.mxu0 0.0
        %992 = vmatmul.mubr.f32.gmra.mxu0 %v329
        %v993 = vpop.f32.mrf.mxu0
        %v994 = vadd.f32 %v920, %v993
        %v995 = vpop.f32.mrf.mxu0
        %996 = vdwg.mxu0
        %s997 = sld [smem:[#allocation3]]
        %v998 = vstv %s997
        %v999 = vmul.f32 %v998, %v905
        %v1000 = vmul.f32 %v998, %v906
        %v1001 = vadd.f32 %v989, %v999
        %v1002 = vadd.f32 %v994, %v1000
        %s1003 = sld [smem:[#allocation3 + $0x1]]
        %v1004 = vld [vmem:[%s307] sm:$0xff]
        %v1005 = vld [vmem:[%s307 + $0x8] sm:$0xff]
        %v1006 = vstv %s1003
        %v1007 = vmul.f32 %v1006, %v1004
        %v1008 = vmul.f32 %v1006, %v1005
        %v1009 = vadd.f32 %v1001, %v1007
        %v1010 = vadd.f32 %v1002, %v1008
        %1011 = vst [vmem:[%s312] sm:$0xff] %v1009
        %1012 = vst [vmem:[%s312 + $0x8] sm:$0xff] %v1010
        %p1013 = scmp.lt.s32.totalorder %s19, 1
        %s1014 = scalar_select %p1013, %s19, 1
        %s1015 = smul.addr %s1014, 2
        %s1016 = smul.addr %s1015, 8
        %s1017 = scalar_lea.vmem %s7, %s1016
        // Predicated region
        $region53: #{d_block_forward.1} parent=47 // pred_check
          %p1018 = pneg %p194
        $region54: #{d_block_forward.1} parent=47 // pred_check_branch
          %1020 = sbr.rel (%p1018) target = $region56
        $region55: #{d_block_forward.1} parent=47 // pred_region
          _
        $region56: #{d_block_forward.1} parent=47 // pred_fallthru
          _
      $region48: #{d_block_forward.1} parent=5 // pred_fallthru
        _
      %p1021 = scmp.le.s32.totalorder 2, %s14
      // Predicated region
      $region57: #{d_block_forward.1} parent=5 // pred_check
        %p1022 = pneg %p1021
      $region58: #{d_block_forward.1} parent=5 // pred_check_branch
        %1024 = sbr.rel (%p1022) target = $region60
      $region59: #{d_block_forward.1} parent=5 // pred_region
        %s1025 = ssub.s32 %s14, 2
        // Predicated region
        $region61: #{d_block_forward.1} parent=59 // pred_check
          %p1026 = pneg %p200
        $region62: #{d_block_forward.1} parent=59 // pred_check_branch
          %1028 = sbr.rel (%p1026) target = $region64
        $region63: #{d_block_forward.1} parent=59 // pred_region
          %p1029 = scmp.lt.s32.totalorder %s20, 1
          %s1030 = scalar_select %p1029, %s20, 1
          %s1031 = smul.addr %s1030, 2
          %s1032 = smul.addr %s1031, 8
          %s1033 = scalar_lea.vmem %s7, %s1032
        $region64: #{d_block_forward.1} parent=59 // pred_fallthru
          _
      $region60: #{d_block_forward.1} parent=5 // pred_fallthru
        _
    $region6: #{d_block_forward.1} parent=1 // loop_footer
      %s18 = sadd.s32 1, %s14
    $region7: #{d_block_forward.1} parent=1 // loop_footer_branch
      %13 = sbr.rel target = $region3
    $region8: #{d_block_forward.1} parent=1 // loop_exit
      _
    %1034 = vsyncpa [#allocation4], 1
    %s1035 = scalar_lea.sflag [#allocation4], 1
    %1036 = vsyncpa %s1035, 1

</llo_original>
